<compile_context>
chip_gen: v7x
topology: tpu7x:2x2x1
jax: 0.10.0
libtpu: 0.0.40
codegen_flags: <defaults>
</compile_context>

<pallas_src>
import functools
import math

import jax
import jax.numpy as jnp
import numpy as np
from jax import lax
from jax.experimental import pallas as pl
from jax.experimental.pallas import tpu as pltpu


LANE = 128
TILE_ROWS = 2048              # (2048, 128) f32 tile = 1 MiB per pipeline buffer
SINGLE_SHOT_MAX_ROWS = 8192   # <= 4 MiB per stream -> single ungridded call
VMEM_LIMIT_BYTES = 32 * 1024 * 1024  # explicit; v5e's 16 MiB default is the binding one


def _cdiv(a, b):
    return -(-a // b)


# ----------------------------------------------------------------------------
# Parameter setup (mirrors Model.__init__ / init_weights shapes), deterministic.
# ----------------------------------------------------------------------------
def make_model_params(key):
    inputs, hidden, outputs = 1, 64, 1
    k1, k2, k3, k4, k5, k6 = jax.random.split(key, 6)
    # affine1: Linear(1 -> 64)
    w1 = jax.random.normal(k1, (hidden, inputs), dtype=jnp.float32) * 0.1
    b1 = jax.random.normal(k2, (hidden,), dtype=jnp.float32) * 0.1
    # Model.init_weights deterministic pattern
    m = hidden // 2
    idx = jnp.arange(m, dtype=jnp.float32)
    w1 = w1.at[:m, 0].set(2.0 * math.pi * idx)
    w1 = w1.at[m:, 0].set(2.0 * math.pi * idx)
    b1 = b1.at[:m].set(0.0)
    b1 = b1.at[m:].set(math.pi / 2.0)
    # affine2: Linear(64 -> 1)   <- only this weight matters for the loss
    w2 = jax.random.normal(k3, (outputs, hidden), dtype=jnp.float32) * 0.1
    b2 = jax.random.normal(k4, (outputs,), dtype=jnp.float32) * 0.1
    # augment: Linear(1 -> 1)
    wa = jax.random.normal(k5, (outputs, inputs), dtype=jnp.float32) * 0.1
    ba = jax.random.normal(k6, (outputs,), dtype=jnp.float32) * 0.1
    return dict(w1=w1, b1=b1, w2=w2, b2=b2, wa=wa, ba=ba)


# ----------------------------------------------------------------------------
# Kernels
# ----------------------------------------------------------------------------
def _loss_small_kernel(preds_ref, targs_ref, w2_ref, out_ref, *, inv_n, reg):
    # Fully fused single-shot path: whole (rows, 128) slabs resident in VMEM;
    # zero-padded lane tail contributes 0, divide uses the TRUE element count.
    d = targs_ref[...].astype(jnp.float32) - preds_ref[...].astype(jnp.float32)
    mse = jnp.sum(d * d) * inv_n
    l1 = jnp.sum(jnp.abs(w2_ref[...].astype(jnp.float32)))
    out_ref[0, 0] = mse + reg * l1


def _ssq_grid_kernel(preds_ref, targs_ref, out_ref, *, rows, num_blocks, spc):
    # Gridded path: grid = (2 halves, blocks-per-half).  The (8, LANE) output
    # block for this half is resident across the "arbitrary" axis and is used
    # directly as the accumulator (VALU-only partial reduce per tile).
    c = pl.program_id(0)   # half / TensorCore index ("parallel")
    j = pl.program_id(1)   # block index within this half ("arbitrary")

    @pl.when(j == 0)
    def _init():
        out_ref[...] = jnp.zeros_like(out_ref)

    d = targs_ref[...].astype(jnp.float32) - preds_ref[...].astype(jnp.float32)
    sq = d * d

    # Row-mask the tail: the last real block may be partial (its trailing rows
    # in the VMEM buffer are NOT guaranteed to be zero) and, when num_blocks is
    # odd, the second half re-reads a clamped "phantom" block that must
    # contribute 0.  Statically skipped when every block is full and even.
    if (rows % TILE_ROWS != 0) or (num_blocks % 2 != 0):
        b = c * spc + j                       # unclamped linear block id
        limit = rows - b * TILE_ROWS          # valid rows in this block (<=0 => none)
        row_id = lax.broadcasted_iota(jnp.int32, (TILE_ROWS, LANE), 0)
        sq = jnp.where(row_id < limit, sq, 0.0)

    # Free reshape (splits the sublane dim on vreg boundaries) + VALU adds.
    out_ref[...] += sq.reshape(TILE_ROWS // 8, 8, LANE).sum(axis=0)


# ----------------------------------------------------------------------------
# Wrapper
# ----------------------------------------------------------------------------
def _to_slab(x, rows):
    """(any shape) -> (rows, 128).  Free bitcast when numel % 128 == 0."""
    n = int(np.prod(x.shape))
    flat = x.reshape(n)
    total = rows * LANE
    if total != n:
        # TODO(synk): for non-lane-aligned n this pad is one extra HBM pass over
        # the stream; a fully copy-free path needs 1-D blocks + element-index
        # masking in-kernel.
        flat = jnp.pad(flat, (0, total - n))
    return flat.reshape(rows, LANE)


def custom_loss(preds, targs, w2, *, regularize=0.01):
    """preds/targs: matching shapes (e.g. (N, 1)); w2: affine2.weight, (1, 64)."""
    assert preds.shape == targs.shape
    n = int(np.prod(preds.shape))
    rows = _cdiv(n, LANE)
    inv_n = np.float32(1.0 / n)
    reg = np.float32(regularize)

    if rows <= SINGLE_SHOT_MAX_ROWS:
        # ------------------------------------------------------------------
        # Tiny / mid inputs: one ungridded fused invocation, SMEM scalar out.
        # ------------------------------------------------------------------
        preds2 = _to_slab(preds, rows)
        targs2 = _to_slab(targs, rows)
        kernel = functools.partial(_loss_small_kernel, inv_n=inv_n, reg=reg)
        out = pl.pallas_call(
            kernel,
            out_shape=jax.ShapeDtypeStruct((1, 1), jnp.float32),
            in_specs=[
                pl.BlockSpec(memory_space=pltpu.MemorySpace.VMEM),
                pl.BlockSpec(memory_space=pltpu.MemorySpace.VMEM),
                pl.BlockSpec(memory_space=pltpu.MemorySpace.VMEM),
            ],
            out_specs=pl.BlockSpec(memory_space=pltpu.MemorySpace.SMEM),
            compiler_params=pltpu.CompilerParams(
                vmem_limit_bytes=VMEM_LIMIT_BYTES),
        )(preds2, targs2, w2)
        return out[0, 0]

    # ----------------------------------------------------------------------
    # Large inputs: grid = (2 halves, blocks-per-half) over (TILE_ROWS, 128)
    # chunks, pipelined DMA, per-half resident (8, 128) accumulator block.
    # On v7x the leading "parallel" axis maps the two halves onto both TCs.
    # ----------------------------------------------------------------------
    preds2 = _to_slab(preds, rows)
    targs2 = _to_slab(targs, rows)
    num_blocks = _cdiv(rows, TILE_ROWS)
    spc = _cdiv(num_blocks, 2)          # blocks per half / per core

    def in_map(c, j):
        # Clamp the phantom block (odd num_blocks) to the last real block;
        # its contribution is fully masked away in-kernel.
        return (jnp.minimum(c * spc + j, num_blocks - 1), 0)

    kernel = functools.partial(_ssq_grid_kernel, rows=rows,
                               num_blocks=num_blocks, spc=spc)
    out = pl.pallas_call(
        kernel,
        out_shape=jax.ShapeDtypeStruct((2 * 8, LANE), jnp.float32),
        grid_spec=pltpu.PrefetchScalarGridSpec(
            num_scalar_prefetch=0,
            grid=(2, spc),
            in_specs=[
                pl.BlockSpec((TILE_ROWS, LANE), in_map),
                pl.BlockSpec((TILE_ROWS, LANE), in_map),
            ],
            out_specs=pl.BlockSpec((8, LANE), lambda c, j: (c, 0)),
        ),
        compiler_params=pltpu.CompilerParams(
            dimension_semantics=("parallel", "arbitrary"),
            vmem_limit_bytes=VMEM_LIMIT_BYTES),
    )(preds2, targs2)

    # Tiny epilogue in plain JAX: 2048-element sum, 64-element L1, scalar affine.
    l1 = jnp.sum(jnp.abs(w2.astype(jnp.float32)))
    return jnp.sum(out) * inv_n + reg * l1


# ----------------------------------------------------------------------------
# Pure-JAX reference (for sanity check)
# ----------------------------------------------------------------------------
def custom_loss_ref(preds, targs, w2, regularize=0.01):
    return jnp.mean((targs - preds) ** 2) + regularize * jnp.sum(jnp.abs(w2))


if __name__ == "__main__":
    key = jax.random.PRNGKey(0)
    kp1, kt1, kp2, kt2, kp3, kt3, km = jax.random.split(key, 7)

    params = make_model_params(km)
    w2 = params["w2"]

    def check(n, kp, kt, rtol, atol):
        preds = jax.random.normal(kp, (n, 1), dtype=jnp.float32)
        targs = jax.random.normal(kt, (n, 1), dtype=jnp.float32)
        got = jax.block_until_ready(custom_loss(preds, targs, w2))
        want = custom_loss_ref(preds, targs, w2)
        np.testing.assert_allclose(np.asarray(got), np.asarray(want),
                                   rtol=rtol, atol=atol)

    # 1) Tiny, lane-aligned -> fused single-shot kernel, zero-copy reshape.
    check(128, kp1, kt1, 1e-5, 1e-6)

    # 2) Mid-size, still single-shot under the raised 8192-row threshold,
    #    lane-aligned -> no wrapper copy at all.
    check(4096 * 128, kp2, kt2, 2e-5, 1e-5)

    # 3) Large + deliberately messy: n % 128 != 0, partial last block, odd
    #    block count -> gridded two-half path with in-kernel tail masking and
    #    phantom-block clamping.
    check(9001 * 128 - 91, kp3, kt3, 5e-5, 1e-5)

    print("KERNEL_OK")
</pallas_src>

<mosaic_0001>
module attributes {stable_mosaic.version = 11 : i64} {
  func.func @_loss_small_kernel(%arg0: memref<1x128xf32, #tpu.memory_space<vmem>>, %arg1: memref<1x128xf32, #tpu.memory_space<vmem>>, %arg2: memref<1x64xf32, #tpu.memory_space<vmem>>, %arg3: memref<1x1xf32, #tpu.memory_space<smem>>) attributes {dimension_semantics = [], scalar_prefetch = 0 : i64, scratch_operands = 0 : i64, tpu.core_type = #tpu.core_type<tc>} {
    %c0 = arith.constant 0 : index
    %c0_0 = arith.constant 0 : index
    %0 = vector.load %arg1[%c0, %c0_0] : memref<1x128xf32, #tpu.memory_space<vmem>>, vector<1x128xf32>
    %c0_1 = arith.constant 0 : index
    %c0_2 = arith.constant 0 : index
    %1 = vector.load %arg0[%c0_1, %c0_2] : memref<1x128xf32, #tpu.memory_space<vmem>>, vector<1x128xf32>
    %2 = arith.subf %0, %1 : vector<1x128xf32>
    %3 = arith.mulf %2, %2 : vector<1x128xf32>
    %4 = vector.shape_cast %3 : vector<1x128xf32> to vector<1x1x128xf32>
    %cst = arith.constant dense<0.000000e+00> : vector<1xf32>
    %5 = vector.multi_reduction <add>, %4, %cst [1, 2] : vector<1x1x128xf32> to vector<1xf32>
    %6 = vector.shape_cast %5 : vector<1xf32> to vector<1x1x1xf32>
    %7 = vector.extract %6[0, 0, 0] : f32 from vector<1x1x1xf32>
    %cst_3 = arith.constant 7.812500e-03 : f32
    %8 = arith.mulf %7, %cst_3 : f32
    %c0_4 = arith.constant 0 : index
    %c0_5 = arith.constant 0 : index
    %9 = vector.load %arg2[%c0_4, %c0_5] : memref<1x64xf32, #tpu.memory_space<vmem>>, vector<1x64xf32>
    %10 = math.absf %9 : vector<1x64xf32>
    %11 = vector.shape_cast %10 : vector<1x64xf32> to vector<1x1x64xf32>
    %cst_6 = arith.constant dense<0.000000e+00> : vector<1xf32>
    %12 = vector.multi_reduction <add>, %11, %cst_6 [1, 2] : vector<1x1x64xf32> to vector<1xf32>
    %13 = vector.shape_cast %12 : vector<1xf32> to vector<1x1x1xf32>
    %14 = vector.extract %13[0, 0, 0] : f32 from vector<1x1x1xf32>
    %cst_7 = arith.constant 0.00999999977 : f32
    %15 = arith.mulf %cst_7, %14 : f32
    %16 = arith.addf %8, %15 : f32
    %c0_8 = arith.constant 0 : index
    %c0_9 = arith.constant 0 : index
    %17 = memref.load %arg3[%c0_8, %c0_9] : memref<1x1xf32, #tpu.memory_space<smem>>
    memref.store %16, %arg3[%c0_8, %c0_9] : memref<1x1xf32, #tpu.memory_space<smem>>
    return
  }
}

</mosaic_0001>

<llo_original>
// kernel: tpu_custom_call.1
$region0: #{tpu_custom_call.1}
  #allocation0 [shape = 'u32[]', space=smem, size = 0x4, offset = 0x4, fixed_abs, tag = 'smem constant byte address 0x4 - core index']
  #allocation1 [shape = 'u32[144,128]{1,0:T(1,128)}', space=vmem, size = 0x12000, scoped, tag = 'internal scratch']
  %s0 = inlined_call_operand.hbm [shape: f32[1,128], index: 0, kind: input, shape index: {}]
  %s1 = inlined_call_operand.vmem [shape: f32[1,128], index: 1, kind: input, shape index: {}]
  %s2 = inlined_call_operand.vmem [shape: f32[1,64], index: 2, kind: input, shape index: {}]
  %s3 = inlined_call_operand.hbm [shape: f32[1,1], index: 3, kind: output, shape index: {}]
  %s4 = sld [smem:[#allocation0]]
  $region26: #{tpu_custom_call.1} parent=0
    _
  %s6 = ssub.s32 1, %s4
  %s7 = scalar_select 0, %s6, %s4
  $region1: #{tpu_custom_call.1} parent=0
    #allocation2 [shape = 'u8[512]{0}', space=vmem, size = 0x400, scoped, tag = 'input window, operand 0, single buffered']
    #allocation3 [shape = 's32[1]{0}', space=sflag, size = 0x4, scoped, tag = 'scoped memory for tpu_custom_call.1']
    #allocation4 [shape = 's32[1]{0}', space=sflag, size = 0x4, scoped, tag = 'scoped memory for tpu_custom_call.1']
    #allocation5 [shape = 'u8[512]{0}', space=smem, size = 0x200, scoped, tag = 'output window, operand 0, single buffered']
    %8 = vsyncpa [#allocation3], 0
    %9 = vsyncpa [#allocation4], 0
    // Predicated region
    $region2: #{tpu_custom_call.1} parent=1 // pred_check
      _
    $region3: #{tpu_custom_call.1} parent=1 // pred_check_branch
      %11 = sbr.rel (0) target = $region5
    $region4: #{tpu_custom_call.1} parent=1 // pred_region
      %s13 = ssub.s32 16, 16
      %14 = vsyncadd [#allocation3], %s13
      %s16 = sshll.u32 [#allocation2], 4
      %s17 = int_to_ptr.vmem [resolvable:$true] %s16
      %19 = dma.hbm_to_vmem [thread:$0]  %s0, 16, %s17, [#allocation3]
    $region5: #{tpu_custom_call.1} parent=1 // pred_fallthru
      _
    // Predicated region
    $region6: #{tpu_custom_call.1} parent=1 // pred_check
      _
    $region7: #{tpu_custom_call.1} parent=1 // pred_check_branch
      %21 = sbr.rel (0) target = $region9
    $region8: #{tpu_custom_call.1} parent=1 // pred_region
      _
    $region9: #{tpu_custom_call.1} parent=1 // pred_fallthru
      _
    // Predicated region
    $region10: #{tpu_custom_call.1} parent=1 // pred_check
      _
    $region11: #{tpu_custom_call.1} parent=1 // pred_check_branch
      %23 = sbr.rel (0) target = $region13
    $region12: #{tpu_custom_call.1} parent=1 // pred_region
      _
    $region13: #{tpu_custom_call.1} parent=1 // pred_fallthru
      _
    // Predicated region
    $region14: #{tpu_custom_call.1} parent=1 // pred_check
      _
    $region15: #{tpu_custom_call.1} parent=1 // pred_check_branch
      %25 = sbr.rel (0) target = $region17
    $region16: #{tpu_custom_call.1} parent=1 // pred_region
      %26 = dma.done [#allocation3], 16
    $region17: #{tpu_custom_call.1} parent=1 // pred_fallthru
      _
    %v27 = vld [vmem:[%s1] sm:$0x1]
    %v28 = vld [vmem:[#allocation2] sm:$0x1]
    %v29 = vsub.f32 %v27, %v28
    %v30 = vmul.f32 %v29, %v29
    %vm31 = vcmask 1040384
    %v32 = vsel %vm31, %v30, 0.0
    %33 = vadd.xlane.f32.xlu0 %v32
    %v34 = vpop.xlane.xlu0 %33
    %v35 = vrot.slane %v34, 4
    %v36 = vadd.f32 %v34, %v35
    %v37 = vrot.slane %v36, 2
    %v38 = vadd.f32 %v36, %v37
    %v39 = vrot.slane %v38, 1
    %v40 = vadd.f32 %v38, %v39
    %s41 = vtos %v40
    %s42 = smul.f32 %s41, 0.0078125
    %v43 = vld [vmem:[%s2] sm:$0x1]
    %v44 = vand.u32 2147483647, %v43
    %vm45 = vcmask 516096
    %v46 = vsel %vm45, %v44, 0.0
    %47 = vadd.xlane.f32.xlu0 %v46
    %v48 = vpop.xlane.xlu0 %47
    %v49 = vrot.slane %v48, 4
    %v50 = vadd.f32 %v48, %v49
    %v51 = vrot.slane %v50, 2
    %v52 = vadd.f32 %v50, %v51
    %v53 = vrot.slane %v52, 1
    %v54 = vadd.f32 %v52, %v53
    %s55 = vtos %v54
    %s56 = smul.f32 %s55, 0.01
    %s57 = sadd.f32 %s42, %s56
    %s58 = scalar_lea.smem [#allocation5], 0
    %59 = sst [smem:[%s58]] %s57
    // Predicated region
    $region18: #{tpu_custom_call.1} parent=1 // pred_check
      _
    $region19: #{tpu_custom_call.1} parent=1 // pred_check_branch
      %61 = sbr.rel (0) target = $region21
    $region20: #{tpu_custom_call.1} parent=1 // pred_region
      %s63 = ssub.s32 16, 16
      %64 = vsyncadd [#allocation4], %s63
      %67 = dma.smem_to_hbm [#allocation5], 16, %s3, [#allocation4]
    $region21: #{tpu_custom_call.1} parent=1 // pred_fallthru
      _
    // Predicated region
    $region22: #{tpu_custom_call.1} parent=1 // pred_check
      _
    $region23: #{tpu_custom_call.1} parent=1 // pred_check_branch
      %69 = sbr.rel (0) target = $region25
    $region24: #{tpu_custom_call.1} parent=1 // pred_region
      %70 = dma.done [#allocation4], 16
    $region25: #{tpu_custom_call.1} parent=1 // pred_fallthru
      _
    %71 = sfence
    %72 = vsyncpa [#allocation3], 1
    %73 = vsyncpa [#allocation4], 1

</llo_original>
